<compile_context>
chip_gen: v5e
topology: v5e:2x2
jax: 0.10.0
libtpu: 0.0.40
codegen_flags: <defaults>
</compile_context>

<pallas_src>
import jax
import jax.numpy as jnp
from jax.experimental import pallas as pl
from jax.experimental.pallas import tpu as pltpu


def _round_up(n, m):
    return ((n + m - 1) // m) * m


def _vmem_budget():
    """Returns (working-set budget for TB derivation, scoped VMEM limit) bytes."""
    try:
        phys = pltpu.get_tpu_info().vmem_capacity_bytes
    except Exception:
        phys = 64 << 20  # conservative default: v7x per-TensorCore VMEM
    budget = int(phys * 0.70)                  # leave pipeline/compiler headroom
    limit = min(int(phys * 0.90), 112 << 20)   # scoped VMEM limit to request
    return budget, limit


def _choose_tb(B, T, D, budget_bytes):
    """Pick the batch-block size TB and the (possibly padded) batch Bp."""
    # Live VMEM per grid step ~= 4x the x block: double-buffered x input, one
    # (TB, T, D) f32 temporary (attention-weighted values), plus headroom.
    row_bytes = 4 * T * D * 4
    tb_max = min(budget_bytes // max(row_bytes, 1), 1024)  # amortization plateaus
    tb_max = max(8, (tb_max // 8) * 8)
    if B >= 16:
        # v7x megacore: keep grid >= 2 so the 'parallel' axis spans both TCs.
        tb_max = min(tb_max, max(8, (B // 2) // 8 * 8))
    if B <= tb_max:
        return B, B                      # whole batch in one block, no padding
    # Largest multiple of 8 <= tb_max that divides B -> exact blocks, no pad.
    for tb in range(tb_max, 7, -8):
        if B % tb == 0:
            return tb, B
    # TODO(synk): ragged-tail fallback pads the batch (one extra HBM pass over
    # x); a masked last block would avoid that copy.
    return tb_max, _round_up(B, tb_max)


def base_model_kernel(x_ref, w_att_ref, w_fc_ref, b_fc_ref,
                      y_ref, logits_ref, att_ref):
    tb, t, d = x_ref.shape
    x = x_ref[...]                                      # (TB, T, D)

    # --- SelfAttention score: Linear(D->1)(x) on the MXU -----------------
    # b_att is a softmax-invariant shift; dropping it is exactly equivalent.
    s = jnp.dot(x.reshape(tb * t, d), w_att_ref[...],
                preferred_element_type=jnp.float32)     # (TB*T, 1)
    s = s.reshape(tb, t)                                # (TB, T) lane-dense rows

    # --- softmax over the sequence axis -----------------------------------
    m = jnp.max(s, axis=-1, keepdims=True)              # (TB, 1)
    e = jnp.exp(s - m)                                   # (TB, T)  (EUP)
    inv = 1.0 / jnp.sum(e, axis=-1, keepdims=True)       # TB exact divides
    att = e * inv                                         # (TB, T)
    att_ref[...] = att

    # --- attention-weighted values, then torch.sum(x, dim=1) --------------
    pooled = jnp.sum(x * att[:, :, None], axis=1)         # (TB, D)

    # --- fc: logits = pooled @ W + b (MXU); class dim lane-padded ---------
    logits = jnp.dot(pooled, w_fc_ref[...],
                     preferred_element_type=jnp.float32) + b_fc_ref[...]
    logits_ref[...] = logits                               # (TB, Cp)

    # --- softmax over classes (padded cols have logits=-1e30 -> exp = 0) --
    m2 = jnp.max(logits, axis=-1, keepdims=True)
    e2 = jnp.exp(logits - m2)
    inv2 = 1.0 / jnp.sum(e2, axis=-1, keepdims=True)
    y_ref[...] = e2 * inv2


def base_model_forward(x, w_att, b_att, w_fc, b_fc):
    """Returns (y, logits, attention_score) matching the PyTorch contract."""
    del b_att  # softmax shift-invariance: no effect on att / pooled / logits
    B, T, D = x.shape
    C = w_fc.shape[1]

    budget, vmem_limit = _vmem_budget()
    TB, Bp = _choose_tb(B, T, D, budget)
    if Bp != B:
        x = jnp.pad(x, ((0, Bp - B), (0, 0), (0, 0)))

    # Lane-dense class dim: pad C to a multiple of 128 with zero weight
    # columns and a very negative bias so padded classes vanish in softmax.
    Cp = _round_up(C, 128)
    if Cp != C:
        w_fc = jnp.pad(w_fc, ((0, 0), (0, Cp - C)))
        b_fc = jnp.pad(b_fc, ((0, 0), (0, Cp - C)), constant_values=-1e30)

    w_att_col = w_att.reshape(D, 1)   # (D, 1): MXU-friendly RHS for the score

    out_shapes = (
        jax.ShapeDtypeStruct((Bp, Cp), jnp.float32),   # y (softmax probs)
        jax.ShapeDtypeStruct((Bp, Cp), jnp.float32),   # logits
        jax.ShapeDtypeStruct((Bp, T), jnp.float32),    # attention, lane-dense
    )
    y, logits, att = pl.pallas_call(
        base_model_kernel,
        out_shape=out_shapes,
        grid=(Bp // TB,),
        in_specs=[
            pl.BlockSpec((TB, T, D), lambda b: (b, 0, 0)),   # x block
            pl.BlockSpec((D, 1),     lambda b: (0, 0)),      # attention weight
            pl.BlockSpec((D, Cp),    lambda b: (0, 0)),      # fc weight (padded)
            pl.BlockSpec((1, Cp),    lambda b: (0, 0)),      # fc bias (padded)
        ],
        out_specs=[
            pl.BlockSpec((TB, Cp), lambda b: (b, 0)),        # y
            pl.BlockSpec((TB, Cp), lambda b: (b, 0)),        # logits
            pl.BlockSpec((TB, T),  lambda b: (b, 0)),        # attention scores
        ],
        compiler_params=pltpu.CompilerParams(
            dimension_semantics=("parallel",),
            vmem_limit_bytes=vmem_limit),
    )(x, w_att_col, w_fc, b_fc)

    # Slice padding off; present attention_score in the PyTorch (B, T, 1) shape.
    return y[:B, :C], logits[:B, :C], att[:B].reshape(B, T, 1)


def reference_forward(x, w_att, b_att, w_fc, b_fc):
    s = jnp.einsum('btd,d->bt', x, w_att[0])[..., None] + b_att[0, 0]   # (B,T,1)
    att = jax.nn.softmax(s, axis=1)
    pooled = jnp.sum(x * att, axis=1)                                    # (B,D)
    logits = pooled @ w_fc + b_fc[0]                                     # (B,C)
    y = jax.nn.softmax(logits, axis=-1)
    return y, logits, att


if __name__ == "__main__":
    B, T, D, C = 2, 8, 32, 10   # batch, seq, input_size, num_classes

    key = jax.random.PRNGKey(0)
    kx, k1, k2, k3, k4 = jax.random.split(key, 5)

    x = jax.random.normal(kx, (B, T, D), dtype=jnp.float32)
    # Deterministic parameter init (synthetic, Linear-like scaling).
    w_att = jax.random.normal(k1, (1, D), dtype=jnp.float32) * (1.0 / jnp.sqrt(D))
    b_att = jax.random.normal(k2, (1, 1), dtype=jnp.float32) * 0.01
    w_fc = jax.random.normal(k3, (D, C), dtype=jnp.float32) * (1.0 / jnp.sqrt(D))
    b_fc = jax.random.normal(k4, (1, C), dtype=jnp.float32) * 0.01

    y, logits, att = jax.block_until_ready(
        base_model_forward(x, w_att, b_att, w_fc, b_fc))

    y_r, logits_r, att_r = reference_forward(x, w_att, b_att, w_fc, b_fc)
    assert jnp.allclose(y, y_r, atol=1e-5), "y mismatch"
    assert jnp.allclose(logits, logits_r, atol=1e-5), "logits mismatch"
    assert jnp.allclose(att, att_r, atol=1e-5), "attention_score mismatch"

    print("KERNEL_OK")
</pallas_src>

<mosaic_0001>
module attributes {stable_mosaic.version = 11 : i64} {
  func.func @base_model_kernel(%arg0: i32, %arg1: memref<2x8x32xf32, #tpu.memory_space<vmem>>, %arg2: memref<32x1xf32, #tpu.memory_space<vmem>>, %arg3: memref<32x128xf32, #tpu.memory_space<vmem>>, %arg4: memref<1x128xf32, #tpu.memory_space<vmem>>, %arg5: memref<2x128xf32, #tpu.memory_space<vmem>>, %arg6: memref<2x128xf32, #tpu.memory_space<vmem>>, %arg7: memref<2x8xf32, #tpu.memory_space<vmem>>) attributes {dimension_semantics = [#tpu.dimension_semantics<parallel>], iteration_bounds = array<i64: 1>, scalar_prefetch = 0 : i64, scratch_operands = 0 : i64, tpu.core_type = #tpu.core_type<tc>, window_params = [{transform_indices = @transform_0, window_bounds = array<i64: 2, 8, 32>}, {pipeline_mode = #tpu.pipeline_mode<synchronous>, transform_indices = @transform_1, window_bounds = array<i64: 32, 1>}, {pipeline_mode = #tpu.pipeline_mode<synchronous>, transform_indices = @transform_2, window_bounds = array<i64: 32, 128>}, {pipeline_mode = #tpu.pipeline_mode<synchronous>, transform_indices = @transform_3, window_bounds = array<i64: 1, 128>}, {transform_indices = @transform_4, window_bounds = array<i64: 2, 128>}, {transform_indices = @transform_5, window_bounds = array<i64: 2, 128>}, {transform_indices = @transform_6, window_bounds = array<i64: 2, 8>}]} {
    %c0 = arith.constant 0 : index
    %c0_0 = arith.constant 0 : index
    %c0_1 = arith.constant 0 : index
    %0 = vector.load %arg1[%c0, %c0_0, %c0_1] : memref<2x8x32xf32, #tpu.memory_space<vmem>>, vector<2x8x32xf32>
    %1 = vector.shape_cast %0 : vector<2x8x32xf32> to vector<16x32xf32>
    %c0_2 = arith.constant 0 : index
    %c0_3 = arith.constant 0 : index
    %2 = vector.load %arg2[%c0_2, %c0_3] : memref<32x1xf32, #tpu.memory_space<vmem>>, vector<32x1xf32>
    %cst = arith.constant dense<0.000000e+00> : vector<16x1xf32>
    %3 = tpu.matmul %1, %2, %cst {dimension_numbers = #tpu.dot_dimension_numbers<[1], [0], [0], [1], [0, 0, 1, 1], [], []>} : vector<16x32xf32>, vector<32x1xf32>, vector<16x1xf32> -> vector<16x1xf32>
    %4 = vector.shape_cast %3 : vector<16x1xf32> to vector<2x8xf32>
    %cst_4 = arith.constant dense<0xFF800000> : vector<2xf32>
    %5 = vector.multi_reduction <maximumf>, %4, %cst_4 [1] : vector<2x8xf32> to vector<2xf32>
    %6 = vector.shape_cast %5 : vector<2xf32> to vector<2x1xf32>
    %7 = vector.broadcast %6 : vector<2x1xf32> to vector<2x8xf32>
    %8 = arith.subf %4, %7 : vector<2x8xf32>
    %9 = math.exp %8 : vector<2x8xf32>
    %cst_5 = arith.constant dense<0.000000e+00> : vector<2xf32>
    %10 = vector.multi_reduction <add>, %9, %cst_5 [1] : vector<2x8xf32> to vector<2xf32>
    %11 = vector.shape_cast %10 : vector<2xf32> to vector<2x1xf32>
    %cst_6 = arith.constant 1.000000e+00 : f32
    %12 = vector.broadcast %cst_6 : f32 to vector<2x1xf32>
    %13 = arith.divf %12, %11 : vector<2x1xf32>
    %14 = vector.broadcast %13 : vector<2x1xf32> to vector<2x8xf32>
    %15 = arith.mulf %9, %14 : vector<2x8xf32>
    %c0_7 = arith.constant 0 : index
    %c0_8 = arith.constant 0 : index
    %16 = vector.load %arg7[%c0_7, %c0_8] : memref<2x8xf32, #tpu.memory_space<vmem>>, vector<2x8xf32>
    tpu.vector_store %arg7[%c0_7, %c0_8], %15 {strides = array<i32>} : memref<2x8xf32, #tpu.memory_space<vmem>>, vector<2x8xf32>,
    %17 = vector.shape_cast %15 : vector<2x8xf32> to vector<2x8x1xf32>
    %18 = vector.broadcast %17 : vector<2x8x1xf32> to vector<2x8x32xf32>
    %19 = arith.mulf %0, %18 : vector<2x8x32xf32>
    %cst_9 = arith.constant dense<0.000000e+00> : vector<2x32xf32>
    %20 = vector.multi_reduction <add>, %19, %cst_9 [1] : vector<2x8x32xf32> to vector<2x32xf32>
    %c0_10 = arith.constant 0 : index
    %c0_11 = arith.constant 0 : index
    %21 = vector.load %arg3[%c0_10, %c0_11] : memref<32x128xf32, #tpu.memory_space<vmem>>, vector<32x128xf32>
    %cst_12 = arith.constant dense<0.000000e+00> : vector<2x128xf32>
    %22 = tpu.matmul %20, %21, %cst_12 {dimension_numbers = #tpu.dot_dimension_numbers<[1], [0], [0], [1], [0, 0, 1, 1], [], []>} : vector<2x32xf32>, vector<32x128xf32>, vector<2x128xf32> -> vector<2x128xf32>
    %c0_13 = arith.constant 0 : index
    %c0_14 = arith.constant 0 : index
    %23 = vector.load %arg4[%c0_13, %c0_14] : memref<1x128xf32, #tpu.memory_space<vmem>>, vector<1x128xf32>
    %24 = vector.broadcast %23 : vector<1x128xf32> to vector<2x128xf32>
    %25 = arith.addf %22, %24 : vector<2x128xf32>
    %c0_15 = arith.constant 0 : index
    %c0_16 = arith.constant 0 : index
    %26 = vector.load %arg6[%c0_15, %c0_16] : memref<2x128xf32, #tpu.memory_space<vmem>>, vector<2x128xf32>
    tpu.vector_store %arg6[%c0_15, %c0_16], %25 {strides = array<i32>} : memref<2x128xf32, #tpu.memory_space<vmem>>, vector<2x128xf32>,
    %cst_17 = arith.constant dense<0xFF800000> : vector<2xf32>
    %27 = vector.multi_reduction <maximumf>, %25, %cst_17 [1] : vector<2x128xf32> to vector<2xf32>
    %28 = vector.shape_cast %27 : vector<2xf32> to vector<2x1xf32>
    %29 = vector.broadcast %28 : vector<2x1xf32> to vector<2x128xf32>
    %30 = arith.subf %25, %29 : vector<2x128xf32>
    %31 = math.exp %30 : vector<2x128xf32>
    %cst_18 = arith.constant dense<0.000000e+00> : vector<2xf32>
    %32 = vector.multi_reduction <add>, %31, %cst_18 [1] : vector<2x128xf32> to vector<2xf32>
    %33 = vector.shape_cast %32 : vector<2xf32> to vector<2x1xf32>
    %cst_19 = arith.constant 1.000000e+00 : f32
    %34 = vector.broadcast %cst_19 : f32 to vector<2x1xf32>
    %35 = arith.divf %34, %33 : vector<2x1xf32>
    %36 = vector.broadcast %35 : vector<2x1xf32> to vector<2x128xf32>
    %37 = arith.mulf %31, %36 : vector<2x128xf32>
    %c0_20 = arith.constant 0 : index
    %c0_21 = arith.constant 0 : index
    %38 = vector.load %arg5[%c0_20, %c0_21] : memref<2x128xf32, #tpu.memory_space<vmem>>, vector<2x128xf32>
    tpu.vector_store %arg5[%c0_20, %c0_21], %37 {strides = array<i32>} : memref<2x128xf32, #tpu.memory_space<vmem>>, vector<2x128xf32>,
    return
  }
  func.func @transform_0(%arg0: i32) -> (i32, i32, i32) {
    %c0_i32 = arith.constant 0 : i32
    %c0_i32_0 = arith.constant 0 : i32
    %c0_i32_1 = arith.constant 0 : i32
    return %arg0, %c0_i32, %c0_i32_0 : i32, i32, i32
  }
  func.func @transform_1(%arg0: i32) -> (i32, i32) {
    %c0_i32 = arith.constant 0 : i32
    %c0_i32_0 = arith.constant 0 : i32
    %c0_i32_1 = arith.constant 0 : i32
    return %c0_i32, %c0_i32_0 : i32, i32
  }
  func.func @transform_2(%arg0: i32) -> (i32, i32) {
    %c0_i32 = arith.constant 0 : i32
    %c0_i32_0 = arith.constant 0 : i32
    %c0_i32_1 = arith.constant 0 : i32
    return %c0_i32, %c0_i32_0 : i32, i32
  }
  func.func @transform_3(%arg0: i32) -> (i32, i32) {
    %c0_i32 = arith.constant 0 : i32
    %c0_i32_0 = arith.constant 0 : i32
    %c0_i32_1 = arith.constant 0 : i32
    return %c0_i32, %c0_i32_0 : i32, i32
  }
  func.func @transform_4(%arg0: i32) -> (i32, i32) {
    %c0_i32 = arith.constant 0 : i32
    %c0_i32_0 = arith.constant 0 : i32
    return %arg0, %c0_i32 : i32, i32
  }
  func.func @transform_5(%arg0: i32) -> (i32, i32) {
    %c0_i32 = arith.constant 0 : i32
    %c0_i32_0 = arith.constant 0 : i32
    return %arg0, %c0_i32 : i32, i32
  }
  func.func @transform_6(%arg0: i32) -> (i32, i32) {
    %c0_i32 = arith.constant 0 : i32
    %c0_i32_0 = arith.constant 0 : i32
    return %arg0, %c0_i32 : i32, i32
  }
}

</mosaic_0001>

<llo_original>
// kernel: tpu_custom_call.1
$region0: #{tpu_custom_call.1}
  #allocation0 [shape = 'u32[]', space=smem, size = 0x4, offset = 0x4, fixed_abs, tag = 'smem constant byte address 0x4 - core index']
  #allocation1 [shape = 'u32[72,128]{1,0:T(1,128)}', space=vmem, size = 0x9000, scoped, tag = 'internal scratch']
  %s0 = inlined_call_operand.hbm [shape: f32[2,8,32], index: 0, kind: input, shape index: {}]
  %s1 = inlined_call_operand.vmem [shape: f32[32,1], index: 1, kind: input, shape index: {}]
  %s2 = inlined_call_operand.vmem [shape: f32[32,128], index: 2, kind: input, shape index: {}]
  %s3 = inlined_call_operand.vmem [shape: f32[1,128], index: 3, kind: input, shape index: {}]
  %s4 = inlined_call_operand.hbm [shape: f32[2,128], index: 4, kind: output, shape index: {0}]
  %s5 = inlined_call_operand.hbm [shape: f32[2,128], index: 5, kind: output, shape index: {1}]
  %s6 = inlined_call_operand.hbm [shape: f32[2,8], index: 6, kind: output, shape index: {2}]
  %7 = xla_tuple %s4, %s5, %s6
  %s8 = sld [smem:[#allocation0]]
  $region46: #{tpu_custom_call.1} parent=0
    _
  %s10 = ssub.s32 1, %s8
  %s11 = scalar_select 0, %s10, %s8
  $region1: #{tpu_custom_call.1} parent=0
    #allocation2 [shape = 'u8[8192]{0}', space=vmem, size = 0x2000, scoped, tag = 'input window, operand 0, single buffered']
    #allocation3 [shape = 's32[1]{0}', space=sflag, size = 0x4, scoped, tag = 'scoped memory for tpu_custom_call.1']
    #allocation4 [shape = 's32[1]{0}', space=sflag, size = 0x4, scoped, tag = 'scoped memory for tpu_custom_call.1']
    #allocation5 [shape = 'u8[1024]{0}', space=vmem, size = 0x400, scoped, tag = 'output window, operand 0, single buffered']
    #allocation6 [shape = 'u8[1024]{0}', space=vmem, size = 0x400, scoped, tag = 'output window, operand 1, single buffered']
    #allocation7 [shape = 's32[1]{0}', space=sflag, size = 0x4, scoped, tag = 'scoped memory for tpu_custom_call.1']
    #allocation8 [shape = 'u8[1024]{0}', space=vmem, size = 0x400, scoped, tag = 'output window, operand 2, single buffered']
    %12 = vsyncpa [#allocation3], 0
    %13 = vsyncpa [#allocation4], 0
    %14 = vsyncpa [#allocation7], 0
    // Predicated region
    $region2: #{tpu_custom_call.1} parent=1 // pred_check
      _
    $region3: #{tpu_custom_call.1} parent=1 // pred_check_branch
      %16 = sbr.rel (0) target = $region5
    $region4: #{tpu_custom_call.1} parent=1 // pred_region
      %18 = vsyncadd [#allocation3], 0
      %s19 = sshll.u32 %s0, 4
      %s20 = int_to_ptr.hbm [resolvable:$true] %s19
      %s21 = sshll.u32 [#allocation2], 4
      %s22 = int_to_ptr.vmem [resolvable:$true] %s21
      %27 = dma.hbm_to_vmem [thread:$0]  %s20, 256, %s22, [#allocation3], 128, 128, 8
    $region5: #{tpu_custom_call.1} parent=1 // pred_fallthru
      _
    // Predicated region
    $region6: #{tpu_custom_call.1} parent=1 // pred_check
      _
    $region7: #{tpu_custom_call.1} parent=1 // pred_check_branch
      %29 = sbr.rel (0) target = $region9
    $region8: #{tpu_custom_call.1} parent=1 // pred_region
      _
    $region9: #{tpu_custom_call.1} parent=1 // pred_fallthru
      _
    // Predicated region
    $region10: #{tpu_custom_call.1} parent=1 // pred_check
      _
    $region11: #{tpu_custom_call.1} parent=1 // pred_check_branch
      %31 = sbr.rel (0) target = $region13
    $region12: #{tpu_custom_call.1} parent=1 // pred_region
      _
    $region13: #{tpu_custom_call.1} parent=1 // pred_fallthru
      _
    // Predicated region
    $region14: #{tpu_custom_call.1} parent=1 // pred_check
      _
    $region15: #{tpu_custom_call.1} parent=1 // pred_check_branch
      %33 = sbr.rel (0) target = $region17
    $region16: #{tpu_custom_call.1} parent=1 // pred_region
      _
    $region17: #{tpu_custom_call.1} parent=1 // pred_fallthru
      _
    // Predicated region
    $region18: #{tpu_custom_call.1} parent=1 // pred_check
      _
    $region19: #{tpu_custom_call.1} parent=1 // pred_check_branch
      %35 = sbr.rel (0) target = $region21
    $region20: #{tpu_custom_call.1} parent=1 // pred_region
      %37 = dma.done [#allocation3], 256
    $region21: #{tpu_custom_call.1} parent=1 // pred_fallthru
      _
    %v38 = vld [vmem:[#allocation2] sm:$0xff]
    %v39 = vld [vmem:[#allocation2 + $0x8] sm:$0xff]
    %v40 = vld [vmem:[%s1] sm:$0xff]
    %v41 = vld [vmem:[%s1 + $0x8] sm:$0xff]
    %v42 = vld [vmem:[%s1 + $0x10] sm:$0xff]
    %v43 = vld [vmem:[%s1 + $0x18] sm:$0xff]
    %vm44 = vcmask 261120
    %v46 = vsel %vm44, %v38, 0
    %v49 = vsel %vm44, %v39, 0
    %51 = vmatpush.msra.mxu0 0.0
    %52 = vmatpush.msra.mxu0 0.0
    %53 = vmatpush.msra.mxu0 0.0
    %54 = vmatpush.msra.mxu0 0.0
    %55 = vmatpush.msra.mxu0 0.0
    %56 = vmatpush.msra.mxu0 0.0
    %57 = vmatpush.msra.mxu0 0.0
    %58 = vmatpush.msra.mxu0 0.0
    %59 = vmatpush.msra.mxu0 0.0
    %60 = vmatpush.msra.mxu0 0.0
    %61 = vmatpush.msra.mxu0 0.0
    %62 = vmatpush.msra.mxu0 0.0
    %63 = vmatpush.msra.mxu0 %v43
    %64 = vmatpush.msra.mxu0 %v42
    %65 = vmatpush.msra.mxu0 %v41
    %66 = vmatpush.msra.mxu0 %v40
    %67 = vmatmul.f32.gmra.mxu0 %v46
    %v68 = vpop.f32.mrf.mxu0
    %v69 = vadd.f32 0.0, %v68
    %70 = vmatmul.f32.gmra.mxu0 %v49
    %v71 = vpop.f32.mrf.mxu0
    %v72 = vadd.f32 0.0, %v71
    %73 = vdwg.mxu0
    %76 = vset.pattern.permute.xlu0 0
    %77 = vperm.xlu0 %76, %v69
    %v78 = vpop.permute.xlu0 %77
    %79 = vset.pattern.permute.xlu0 0
    %80 = vperm.xlu0 %79, %v72
    %v81 = vpop.permute.xlu0 %80
    %v82 = vlaneseq
    %v83 = vand.u32 %v82, 127
    %v84 = vperm.slane %v78, %v83
    %v85 = vperm.slane %v81, %v83
    %vm86 = vcmask 1041409
    %v87 = vsel %vm86, %v85, %v84
    %vm89 = vcmask 58368
    %v90 = vsel %vm89, %v87, -inf
    %91 = vmax.xlane.f32.xlu0 %v90
    %v92 = vpop.xlane.xlu0 %91
    %v94 = vperm.slane %v92, 0
    %v95 = vperm.slane %v92, 1
    %v98 = vsub.f32 %v69, %v94
    %v99 = vsub.f32 %v72, %v95
    %v100 = vmul.f32 %v98, 1.442695
    %v101 = vpow.pop %v100
    %v102 = vmul.f32 %v99, 1.442695
    %v103 = vpow.pop %v102
    %106 = vset.pattern.permute.xlu0 0
    %107 = vperm.xlu0 %106, %v101
    %v108 = vpop.permute.xlu0 %107
    %109 = vset.pattern.permute.xlu0 0
    %110 = vperm.xlu0 %109, %v103
    %v111 = vpop.permute.xlu0 %110
    %v112 = vperm.slane %v108, %v83
    %v113 = vperm.slane %v111, %v83
    %v114 = vsel %vm86, %v113, %v112
    %v116 = vsel %vm89, %v114, 0.0
    %117 = vadd.xlane.f32.xlu0 %v116
    %v118 = vpop.xlane.xlu0 %117
    %v119 = vrcp.pop %v118
    %v120 = vmul.f32 %v118, %v119
    %v121 = vsub.f32 1.0, %v120
    %v122 = vmul.f32 %v119, %v121
    %v123 = vadd.f32 %v119, %v122
    %vm124 = vweird.f32 %v118
    %vm125 = vweird.f32 %v119
    %vm126 = vmor %vm124, %vm125
    %v127 = vsel %vm126, %v119, %v123
    %v128 = vand.u32 2147483647, %v118
    %vm129 = vcmp.eq.f32.partialorder %v128, 8.507059e+37
    %v130 = vand.u32 %v118, 2147483648
    %v131 = vor.u32 1.1754944e-38, %v130
    %v132 = vsel %vm129, %v131, %v127
    %v133 = vmul.f32 1.0, %v132
    %v135 = vperm.slane %v133, 0
    %v136 = vperm.slane %v133, 1
    %v139 = vmul.f32 %v101, %v135
    %v140 = vmul.f32 %v103, %v136
    %143 = vset.pattern.permute.xlu0 0
    %144 = vperm.xlu0 %143, %v139
    %v145 = vpop.permute.xlu0 %144
    %146 = vset.pattern.permute.xlu0 0
    %147 = vperm.xlu0 %146, %v140
    %v148 = vpop.permute.xlu0 %147
    %v149 = vperm.slane %v145, %v83
    %v150 = vperm.slane %v148, %v83
    %v151 = vsel %vm86, %v150, %v149
    %153 = vst.msk [vmem:[#allocation8] sm:$0x3] %vm89, %v151
    %v156 = vmul.f32 %v38, %v145
    %v157 = vmul.f32 %v39, %v148
    %v158 = vsel %vm44, %v156, 0.0
    %v159 = vrot.slane %v158, 4
    %v160 = vadd.f32 %v158, %v159
    %v161 = vrot.slane %v160, 2
    %v162 = vadd.f32 %v160, %v161
    %v163 = vrot.slane %v162, 1
    %v164 = vadd.f32 %v162, %v163
    %v165 = vsel %vm44, %v157, 0.0
    %v166 = vrot.slane %v165, 4
    %v167 = vadd.f32 %v165, %v166
    %v168 = vrot.slane %v167, 2
    %v169 = vadd.f32 %v167, %v168
    %v170 = vrot.slane %v169, 1
    %v171 = vadd.f32 %v169, %v170
    %v172 = vld [vmem:[%s2] sm:$0xff]
    %v173 = vld [vmem:[%s2 + $0x8] sm:$0xff]
    %v174 = vld [vmem:[%s2 + $0x10] sm:$0xff]
    %v175 = vld [vmem:[%s2 + $0x18] sm:$0xff]
    %v176 = vld [vmem:[%s3] sm:$0x1]
    %v178 = vperm.slane %v176, 0
    %v182 = vsel %vm86, %v171, %v164
    %v183 = vsel %vm44, %v182, 0
    %185 = vmatpush.msra.mxu0 0.0
    %186 = vmatpush.msra.mxu0 0.0
    %187 = vmatpush.msra.mxu0 0.0
    %188 = vmatpush.msra.mxu0 0.0
    %189 = vmatpush.msra.mxu0 0.0
    %190 = vmatpush.msra.mxu0 0.0
    %191 = vmatpush.msra.mxu0 0.0
    %192 = vmatpush.msra.mxu0 0.0
    %193 = vmatpush.msra.mxu0 0.0
    %194 = vmatpush.msra.mxu0 0.0
    %195 = vmatpush.msra.mxu0 0.0
    %196 = vmatpush.msra.mxu0 0.0
    %197 = vmatpush.msra.mxu0 %v175
    %198 = vmatpush.msra.mxu0 %v174
    %199 = vmatpush.msra.mxu0 %v173
    %200 = vmatpush.msra.mxu0 %v172
    %201 = vmatmul.f32.gmra.mxu0 %v183
    %v202 = vpop.f32.mrf.mxu0
    %v203 = vadd.f32 %v178, %v202
    %204 = vdwg.mxu0
    %205 = vst [vmem:[#allocation6] sm:$0x3] %v203
    %vm206 = vcmask 1041408
    %v207 = vsel %vm206, %v203, -inf
    %208 = vmax.xlane.f32.xlu0 %v207
    %v209 = vpop.xlane.xlu0 %208
    %v210 = vsub.f32 %v203, %v209
    %v211 = vmul.f32 %v210, 1.442695
    %v212 = vpow.pop %v211
    %v213 = vsel %vm206, %v212, 0.0
    %214 = vadd.xlane.f32.xlu0 %v213
    %v215 = vpop.xlane.xlu0 %214
    %v216 = vrcp.pop %v215
    %v217 = vmul.f32 %v215, %v216
    %v218 = vsub.f32 1.0, %v217
    %v219 = vmul.f32 %v216, %v218
    %v220 = vadd.f32 %v216, %v219
    %vm221 = vweird.f32 %v215
    %vm222 = vweird.f32 %v216
    %vm223 = vmor %vm221, %vm222
    %v224 = vsel %vm223, %v216, %v220
    %v225 = vand.u32 2147483647, %v215
    %vm226 = vcmp.eq.f32.partialorder %v225, 8.507059e+37
    %v227 = vand.u32 %v215, 2147483648
    %v228 = vor.u32 1.1754944e-38, %v227
    %v229 = vsel %vm226, %v228, %v224
    %v230 = vmul.f32 1.0, %v229
    %v231 = vmul.f32 %v212, %v230
    %232 = vst [vmem:[#allocation5] sm:$0x3] %v231
    // Predicated region
    $region22: #{tpu_custom_call.1} parent=1 // pred_check
      _
    $region23: #{tpu_custom_call.1} parent=1 // pred_check_branch
      %234 = sbr.rel (0) target = $region25
    $region24: #{tpu_custom_call.1} parent=1 // pred_region
      %236 = vsyncadd [#allocation4], 0
      %s238 = sshll.u32 [#allocation5], 4
      %s239 = int_to_ptr.vmem [resolvable:$true] %s238
      %s240 = sshll.u32 %s4, 4
      %s241 = int_to_ptr.hbm [resolvable:$true] %s240
      %243 = dma.vmem_to_hbm [thread:$0]  %s239, 32, %s241, [#allocation4]
    $region25: #{tpu_custom_call.1} parent=1 // pred_fallthru
      _
    // Predicated region
    $region26: #{tpu_custom_call.1} parent=1 // pred_check
      _
    $region27: #{tpu_custom_call.1} parent=1 // pred_check_branch
      %245 = sbr.rel (0) target = $region29
    $region28: #{tpu_custom_call.1} parent=1 // pred_region
      %247 = vsyncadd [#allocation7], 0
      %s249 = sshll.u32 [#allocation6], 4
      %s250 = int_to_ptr.vmem [resolvable:$true] %s249
      %s251 = sshll.u32 %s5, 4
      %s252 = int_to_ptr.hbm [resolvable:$true] %s251
      %254 = dma.vmem_to_hbm [thread:$0]  %s250, 32, %s252, [#allocation7]
    $region29: #{tpu_custom_call.1} parent=1 // pred_fallthru
      _
    // Predicated region
    $region30: #{tpu_custom_call.1} parent=1 // pred_check
      _
    $region31: #{tpu_custom_call.1} parent=1 // pred_check_branch
      %256 = sbr.rel (0) target = $region33
    $region32: #{tpu_custom_call.1} parent=1 // pred_region
      %258 = vsyncadd [#allocation7], 0
      %s260 = sshll.u32 [#allocation8], 4
      %s261 = int_to_ptr.vmem [resolvable:$true] %s260
      %s262 = sshll.u32 %s6, 4
      %s263 = int_to_ptr.hbm [resolvable:$true] %s262
      %265 = dma.vmem_to_hbm [thread:$0]  %s261, 32, %s263, [#allocation7]
    $region33: #{tpu_custom_call.1} parent=1 // pred_fallthru
      _
    // Predicated region
    $region34: #{tpu_custom_call.1} parent=1 // pred_check
      _
    $region35: #{tpu_custom_call.1} parent=1 // pred_check_branch
      %267 = sbr.rel (0) target = $region37
    $region36: #{tpu_custom_call.1} parent=1 // pred_region
      %269 = dma.done [#allocation4], 32
    $region37: #{tpu_custom_call.1} parent=1 // pred_fallthru
      _
    // Predicated region
    $region38: #{tpu_custom_call.1} parent=1 // pred_check
      _
    $region39: #{tpu_custom_call.1} parent=1 // pred_check_branch
      %271 = sbr.rel (0) target = $region41
    $region40: #{tpu_custom_call.1} parent=1 // pred_region
      %273 = dma.done [#allocation7], 32
    $region41: #{tpu_custom_call.1} parent=1 // pred_fallthru
      _
    // Predicated region
    $region42: #{tpu_custom_call.1} parent=1 // pred_check
      _
    $region43: #{tpu_custom_call.1} parent=1 // pred_check_branch
      %275 = sbr.rel (0) target = $region45
    $region44: #{tpu_custom_call.1} parent=1 // pred_region
      %277 = dma.done [#allocation7], 32
    $region45: #{tpu_custom_call.1} parent=1 // pred_fallthru
      _
    %278 = vsyncpa [#allocation3], 1
    %279 = vsyncpa [#allocation4], 1
    %280 = vsyncpa [#allocation7], 1

</llo_original>
